<compile_context>
chip_gen: v6e
topology: v6e:2x2x1
jax: 0.10.0
libtpu: 0.0.40
codegen_flags: <defaults>
</compile_context>

<pallas_src>
import functools

import jax
import jax.numpy as jnp
from jax.experimental import pallas as pl
from jax.experimental.pallas import tpu as pltpu


def _round_up(x, m):
    return ((x + m - 1) // m) * m


def _vmem_capacity_bytes():
    """Physical per-core VMEM; falls back to device_kind heuristics."""
    try:
        info = pltpu.get_tpu_info()
        cap = getattr(info, "vmem_capacity_bytes", None)
        if cap:
            return int(cap)
    except Exception:
        pass
    try:
        kind = jax.devices()[0].device_kind.lower()
    except Exception:
        kind = ""
    return (64 << 20) if "v7" in kind else (128 << 20)


# --------------------------------------------------------------------------
# Kernel: fused 2-layer MLP + fused (mu | log_sigma) head, one output block.
# --------------------------------------------------------------------------
def encoder_kernel(x_ref, w1_ref, b1_ref, w2_ref, b2_ref, wh_ref, bh_ref,
                   out_ref, *, latent):
    # x is fed raw (f32) and cast to a bf16 MXU operand in-kernel (no HBM pre-pass).
    x = x_ref[...].astype(jnp.bfloat16)

    acc1 = jnp.dot(x, w1_ref[...], preferred_element_type=jnp.float32)
    # bias-add + ReLU in bf16 (bf16 VALU on v6e/v7x; halves VPU traffic / vreg footprint).
    h1 = jnp.maximum(acc1.astype(jnp.bfloat16) + b1_ref[...], 0.0)

    acc2 = jnp.dot(h1, w2_ref[...], preferred_element_type=jnp.float32)
    h2 = jnp.maximum(acc2.astype(jnp.bfloat16) + b2_ref[...], 0.0)

    # Fused heads: lanes [0, L) = mu, [L, 2L) = log_sigma, rest = zero padding.
    # Head bias add and exp stay in f32.
    heads = jnp.dot(h2, wh_ref[...], preferred_element_type=jnp.float32) + bh_ref[...]
    lane = jax.lax.broadcasted_iota(jnp.int32, heads.shape, 1)
    is_mu = lane < latent
    # Mask the exp input on mu/padding lanes: no wasted EUP work, no overflow risk.
    sigma = jnp.exp(jnp.where(is_mu, 0.0, heads))
    out_ref[...] = jnp.where(is_mu, heads, sigma).astype(out_ref.dtype)


# --------------------------------------------------------------------------
# Parameter preparation (one-time): fuse heads, pad output dims to 128, bf16.
# --------------------------------------------------------------------------
def prepare_params(params, D_in, H, latent):
    w1, b1, w2, b2, wmu, bmu, wls, bls = params
    Hp = _round_up(H, 128)
    Np = _round_up(2 * latent, 128)

    def pad2(a, r, c):
        return jnp.pad(a, ((0, r - a.shape[0]), (0, c - a.shape[1])))

    wh = jnp.concatenate([wmu, wls], axis=1)   # (H, 2L)
    bh = jnp.concatenate([bmu, bls], axis=1)   # (1, 2L)

    return dict(
        # W1 keeps its un-padded K dim so x can be fed without any pre-padding.
        w1=pad2(w1, D_in, Hp).astype(jnp.bfloat16),
        b1=pad2(b1, 1, Hp).astype(jnp.bfloat16),
        w2=pad2(w2, Hp, Hp).astype(jnp.bfloat16),
        b2=pad2(b2, 1, Hp).astype(jnp.bfloat16),
        wh=pad2(wh, Hp, Np).astype(jnp.bfloat16),
        bh=pad2(bh, 1, Np).astype(jnp.float32),
        D_in=D_in, H=H, latent=latent, Hp=Hp, Np=Np,
    )


def _pick_tile_b(B, bytes_per_row, resident_bytes, vmem_cap):
    """Largest batch tile that fits the VMEM budget; prefers an even number of
    grid steps (v7x megacore load-balance) among tiles >= 128 rows."""
    budget = int(0.7 * vmem_cap) - resident_bytes
    cands = [t for t in (2048, 1024, 512, 256, 128, 64, 32, 16)
             if t <= B and B % t == 0]
    fits = lambda t: t * bytes_per_row <= budget
    for t in cands:                                   # even step count, big tiles
        if t >= 128 and (B // t) % 2 == 0 and fits(t):
            return t
    for t in cands:                                   # any >= 2 steps
        if B // t >= 2 and fits(t):
            return t
    if fits(B):                                       # single step, whole batch
        return B
    for t in cands:
        if fits(t):
            return t
    return cands[-1] if cands else B


# --------------------------------------------------------------------------
# Wrapper
# --------------------------------------------------------------------------
def encoder_forward(x, prep, *, tile_b=None, single_buffer_weights=True,
                    return_fused=False):
    """Fused MLP encoder. Returns (mu, sigma) [bf16], or the fused padded
    (B, Np) buffer when return_fused=True (avoids the post-kernel slices)."""
    B, D_in = x.shape
    assert D_in == prep["D_in"]
    L = prep["latent"]
    Hp, Np = prep["Hp"], prep["Np"]

    cap = _vmem_capacity_bytes()
    wbuf = 1 if single_buffer_weights else 2
    # bf16 weights + (bf16 b1/b2, f32 bh) biases, per buffer copy.
    weight_bytes = 2 * (D_in * Hp + Hp * Hp + Hp * Np) + (2 * Hp + 2 * Hp + 4 * Np)
    # No K-tiled reduction path yet: all weights must be VMEM-resident.
    assert wbuf * weight_bytes <= int(0.8 * cap), (
        f"Encoder weights ({wbuf * weight_bytes / 2**20:.1f} MiB) exceed the VMEM "
        f"budget ({0.8 * cap / 2**20:.0f} MiB); H is too large for the single-pass "
        "kernel -- a K-tiled (reduction grid axis + f32 accumulator) path is needed.")

    # Per-row VMEM: double-buffered x (f32) + out (bf16) tiles, f32 h1/h2/heads working set.
    bytes_per_row = 2 * 4 * D_in + 2 * 2 * Np + 3 * 4 * Hp
    if tile_b is None:
        tile_b = _pick_tile_b(B, bytes_per_row, wbuf * weight_bytes, cap)
    assert B % tile_b == 0 and (tile_b == B or tile_b % 8 == 0)

    grid = (B // tile_b,)

    # ~15% headroom below physical VMEM (never request the whole 64 MiB on v7x;
    # may exceed 64 MiB on v5e/v6e when the working set justifies it).
    vmem_limit = int(min(0.85 * cap,
                         max(16 << 20,
                             2 * (wbuf * weight_bytes + tile_b * bytes_per_row))))

    cost = pl.CostEstimate(
        flops=2 * B * (D_in * Hp + Hp * Hp + Hp * Np),
        transcendentals=B * Np,
        bytes_accessed=B * D_in * 4 + weight_bytes + B * Np * 2,
    )

    def build(single_buf):
        def rep(shape):
            # Grid-invariant weights: DMA'd once; single-buffer to halve their
            # VMEM footprint (double-buffering them gains nothing).
            if single_buf:
                return pl.BlockSpec(shape, lambda i: (0, 0),
                                    pipeline_mode=pl.Buffered(1))
            return pl.BlockSpec(shape, lambda i: (0, 0))

        return pl.pallas_call(
            functools.partial(encoder_kernel, latent=L),
            out_shape=jax.ShapeDtypeStruct((B, Np), jnp.bfloat16),
            grid_spec=pltpu.PrefetchScalarGridSpec(
                num_scalar_prefetch=0,
                grid=grid,
                in_specs=[
                    pl.BlockSpec((tile_b, D_in), lambda i: (i, 0)),  # x (raw, un-padded)
                    rep((D_in, Hp)), rep((1, Hp)),                   # W1, b1
                    rep((Hp, Hp)), rep((1, Hp)),                     # W2, b2
                    rep((Hp, Np)), rep((1, Np)),                     # [Wmu|Wls], [bmu|bls]
                ],
                out_specs=pl.BlockSpec((tile_b, Np), lambda i: (i, 0)),
            ),
            compiler_params=pltpu.CompilerParams(
                dimension_semantics=("parallel",),
                vmem_limit_bytes=vmem_limit),
            cost_estimate=cost,
        )

    args = (x, prep["w1"], prep["b1"], prep["w2"], prep["b2"],
            prep["wh"], prep["bh"])
    if single_buffer_weights:
        try:
            out = build(True)(*args)
        except Exception:
            # Older jax without pipeline_mode support: fall back to default buffering.
            out = build(False)(*args)
    else:
        out = build(False)(*args)

    if return_fused:
        return out  # lanes [0,L)=mu, [L,2L)=sigma; slice in the consumer's jit.
    mu = out[:, :L]
    sigma = out[:, L:2 * L]
    # TODO(synk): torch.distributions.Normal has no Pallas equivalent; we
    # return the (loc, scale) pair that parameterizes it.
    return mu, sigma


# --------------------------------------------------------------------------
# Init + references
# --------------------------------------------------------------------------
def init_params(key, D_in, H, latent_size):
    """PyTorch-Linear-style init (uniform +/- 1/sqrt(fan_in)); weights stored
    transposed as (in_features, out_features)."""
    ks = jax.random.split(key, 8)

    def lin(kw, kb, fan_in, fan_out):
        bound = 1.0 / jnp.sqrt(fan_in)
        w = jax.random.uniform(kw, (fan_in, fan_out), jnp.float32, -bound, bound)
        b = jax.random.uniform(kb, (1, fan_out), jnp.float32, -bound, bound)
        return w, b

    w1, b1 = lin(ks[0], ks[1], D_in, H)
    w2, b2 = lin(ks[2], ks[3], H, H)
    wmu, bmu = lin(ks[4], ks[5], H, latent_size)
    wls, bls = lin(ks[6], ks[7], H, latent_size)
    return (w1, b1, w2, b2, wmu, bmu, wls, bls)


def encoder_ref_f32(x, params):
    w1, b1, w2, b2, wmu, bmu, wls, bls = params
    h1 = jnp.maximum(x @ w1 + b1, 0.0)
    h2 = jnp.maximum(h1 @ w2 + b2, 0.0)
    return h2 @ wmu + bmu, jnp.exp(h2 @ wls + bls)


def encoder_ref_bf16(x, params):
    # Emulates the kernel's numerics: bf16 MXU operands + f32 accumulation,
    # bf16 bias/ReLU for h1/h2, f32 head bias + exp, bf16 output.
    w1, b1, w2, b2, wmu, bmu, wls, bls = params
    bf = jnp.bfloat16
    dot = lambda a, b: jnp.dot(a, b.astype(bf), preferred_element_type=jnp.float32)
    h1 = jnp.maximum(dot(x.astype(bf), w1).astype(bf) + b1.astype(bf), 0.0)
    h2 = jnp.maximum(dot(h1, w2).astype(bf) + b2.astype(bf), 0.0)
    mu = (dot(h2, wmu) + bmu).astype(bf)
    sigma = jnp.exp(dot(h2, wls) + bls).astype(bf)
    return mu, sigma


if __name__ == "__main__":
    # Small shapes consistent with the module: batch=8, D_in=32, H=32, latent=16
    B, D_in, H, latent_size = 8, 32, 32, 16

    key = jax.random.PRNGKey(0)
    kx, kp = jax.random.split(key)
    x = jax.random.normal(kx, (B, D_in), jnp.float32)
    params = init_params(kp, D_in, H, latent_size)
    prep = prepare_params(params, D_in, H, latent_size)

    mu, sigma = encoder_forward(x, prep)
    jax.block_until_ready((mu, sigma))

    assert mu.shape == (B, latent_size) and sigma.shape == (B, latent_size)
    mu32 = mu.astype(jnp.float32)
    sig32 = sigma.astype(jnp.float32)

    # Semantic check vs. f32 PyTorch-style reference (loose tol: bf16 numerics).
    mu_f, sigma_f = encoder_ref_f32(x, params)
    assert jnp.allclose(mu32, mu_f, atol=1e-1, rtol=1e-1)
    assert jnp.allclose(sig32, sigma_f, atol=1e-1, rtol=1e-1)

    # Tighter check vs. a reference using the same bf16 numerics as the kernel.
    mu_b, sigma_b = encoder_ref_bf16(x, params)
    assert jnp.allclose(mu32, mu_b.astype(jnp.float32), atol=2e-2, rtol=2e-2)
    assert jnp.allclose(sig32, sigma_b.astype(jnp.float32), atol=2e-2, rtol=2e-2)

    assert jnp.all(sig32 > 0.0)
    print("KERNEL_OK")
</pallas_src>

<mosaic_0001>
module attributes {stable_mosaic.version = 11 : i64} {
  func.func @encoder_kernel(%arg0: i32, %arg1: memref<8x32xf32, #tpu.memory_space<vmem>>, %arg2: memref<32x128xbf16, #tpu.memory_space<vmem>>, %arg3: memref<1x128xbf16, #tpu.memory_space<vmem>>, %arg4: memref<128x128xbf16, #tpu.memory_space<vmem>>, %arg5: memref<1x128xbf16, #tpu.memory_space<vmem>>, %arg6: memref<128x128xbf16, #tpu.memory_space<vmem>>, %arg7: memref<1x128xf32, #tpu.memory_space<vmem>>, %arg8: memref<8x128xbf16, #tpu.memory_space<vmem>>) attributes {dimension_semantics = [#tpu.dimension_semantics<parallel>], iteration_bounds = array<i64: 1>, scalar_prefetch = 0 : i64, scratch_operands = 0 : i64, tpu.core_type = #tpu.core_type<tc>, window_params = [{transform_indices = @transform_0, window_bounds = array<i64: 8, 32>}, {pipeline_mode = #tpu.pipeline_mode<synchronous>, transform_indices = @transform_1, window_bounds = array<i64: 32, 128>}, {pipeline_mode = #tpu.pipeline_mode<synchronous>, transform_indices = @transform_2, window_bounds = array<i64: 1, 128>}, {pipeline_mode = #tpu.pipeline_mode<synchronous>, transform_indices = @transform_3, window_bounds = array<i64: 128, 128>}, {pipeline_mode = #tpu.pipeline_mode<synchronous>, transform_indices = @transform_4, window_bounds = array<i64: 1, 128>}, {pipeline_mode = #tpu.pipeline_mode<synchronous>, transform_indices = @transform_5, window_bounds = array<i64: 128, 128>}, {pipeline_mode = #tpu.pipeline_mode<synchronous>, transform_indices = @transform_6, window_bounds = array<i64: 1, 128>}, {transform_indices = @transform_7, window_bounds = array<i64: 8, 128>}]} {
    %c0 = arith.constant 0 : index
    %c0_0 = arith.constant 0 : index
    %0 = vector.load %arg1[%c0, %c0_0] : memref<8x32xf32, #tpu.memory_space<vmem>>, vector<8x32xf32>
    %1 = arith.truncf %0 : vector<8x32xf32> to vector<8x32xbf16>
    %c0_1 = arith.constant 0 : index
    %c0_2 = arith.constant 0 : index
    %2 = vector.load %arg2[%c0_1, %c0_2] : memref<32x128xbf16, #tpu.memory_space<vmem>>, vector<32x128xbf16>
    %cst = arith.constant dense<0.000000e+00> : vector<8x128xf32>
    %3 = tpu.matmul %1, %2, %cst {dimension_numbers = #tpu.dot_dimension_numbers<[1], [0], [0], [1], [0, 0, 1, 1], [], []>} : vector<8x32xbf16>, vector<32x128xbf16>, vector<8x128xf32> -> vector<8x128xf32>
    %4 = arith.truncf %3 : vector<8x128xf32> to vector<8x128xbf16>
    %c0_3 = arith.constant 0 : index
    %c0_4 = arith.constant 0 : index
    %5 = vector.load %arg3[%c0_3, %c0_4] : memref<1x128xbf16, #tpu.memory_space<vmem>>, vector<1x128xbf16>
    %6 = vector.broadcast %5 : vector<1x128xbf16> to vector<8x128xbf16>
    %7 = arith.addf %4, %6 : vector<8x128xbf16>
    %cst_5 = arith.constant 0.000000e+00 : bf16
    %8 = vector.broadcast %cst_5 : bf16 to vector<8x128xbf16>
    %9 = arith.maximumf %7, %8 : vector<8x128xbf16>
    %c0_6 = arith.constant 0 : index
    %c0_7 = arith.constant 0 : index
    %10 = vector.load %arg4[%c0_6, %c0_7] : memref<128x128xbf16, #tpu.memory_space<vmem>>, vector<128x128xbf16>
    %cst_8 = arith.constant dense<0.000000e+00> : vector<8x128xf32>
    %11 = tpu.matmul %9, %10, %cst_8 {dimension_numbers = #tpu.dot_dimension_numbers<[1], [0], [0], [1], [0, 0, 1, 1], [], []>} : vector<8x128xbf16>, vector<128x128xbf16>, vector<8x128xf32> -> vector<8x128xf32>
    %12 = arith.truncf %11 : vector<8x128xf32> to vector<8x128xbf16>
    %c0_9 = arith.constant 0 : index
    %c0_10 = arith.constant 0 : index
    %13 = vector.load %arg5[%c0_9, %c0_10] : memref<1x128xbf16, #tpu.memory_space<vmem>>, vector<1x128xbf16>
    %14 = vector.broadcast %13 : vector<1x128xbf16> to vector<8x128xbf16>
    %15 = arith.addf %12, %14 : vector<8x128xbf16>
    %cst_11 = arith.constant 0.000000e+00 : bf16
    %16 = vector.broadcast %cst_11 : bf16 to vector<8x128xbf16>
    %17 = arith.maximumf %15, %16 : vector<8x128xbf16>
    %c0_12 = arith.constant 0 : index
    %c0_13 = arith.constant 0 : index
    %18 = vector.load %arg6[%c0_12, %c0_13] : memref<128x128xbf16, #tpu.memory_space<vmem>>, vector<128x128xbf16>
    %cst_14 = arith.constant dense<0.000000e+00> : vector<8x128xf32>
    %19 = tpu.matmul %17, %18, %cst_14 {dimension_numbers = #tpu.dot_dimension_numbers<[1], [0], [0], [1], [0, 0, 1, 1], [], []>} : vector<8x128xbf16>, vector<128x128xbf16>, vector<8x128xf32> -> vector<8x128xf32>
    %c0_15 = arith.constant 0 : index
    %c0_16 = arith.constant 0 : index
    %20 = vector.load %arg7[%c0_15, %c0_16] : memref<1x128xf32, #tpu.memory_space<vmem>>, vector<1x128xf32>
    %21 = vector.broadcast %20 : vector<1x128xf32> to vector<8x128xf32>
    %22 = arith.addf %19, %21 : vector<8x128xf32>
    %23 = tpu.iota {dimensions = array<i32: 1>} : vector<8x128xi32>
    %c16_i32 = arith.constant 16 : i32
    %24 = vector.broadcast %c16_i32 : i32 to vector<8x128xi32>
    %25 = arith.cmpi slt, %23, %24 : vector<8x128xi32>
    %cst_17 = arith.constant 0.000000e+00 : f32
    %26 = vector.broadcast %cst_17 : f32 to vector<8x128xf32>
    %27 = arith.select %25, %26, %22 : vector<8x128xi1>, vector<8x128xf32>
    %28 = math.exp %27 : vector<8x128xf32>
    %29 = arith.select %25, %22, %28 : vector<8x128xi1>, vector<8x128xf32>
    %30 = arith.truncf %29 : vector<8x128xf32> to vector<8x128xbf16>
    %c0_18 = arith.constant 0 : index
    %c0_19 = arith.constant 0 : index
    %31 = vector.load %arg8[%c0_18, %c0_19] : memref<8x128xbf16, #tpu.memory_space<vmem>>, vector<8x128xbf16>
    tpu.vector_store %arg8[%c0_18, %c0_19], %30 {strides = array<i32>} : memref<8x128xbf16, #tpu.memory_space<vmem>>, vector<8x128xbf16>,
    return
  }
  func.func @transform_0(%arg0: i32) -> (i32, i32) {
    %c0_i32 = arith.constant 0 : i32
    %c0_i32_0 = arith.constant 0 : i32
    return %arg0, %c0_i32 : i32, i32
  }
  func.func @transform_1(%arg0: i32) -> (i32, i32) {
    %c0_i32 = arith.constant 0 : i32
    %c0_i32_0 = arith.constant 0 : i32
    %c0_i32_1 = arith.constant 0 : i32
    return %c0_i32, %c0_i32_0 : i32, i32
  }
  func.func @transform_2(%arg0: i32) -> (i32, i32) {
    %c0_i32 = arith.constant 0 : i32
    %c0_i32_0 = arith.constant 0 : i32
    %c0_i32_1 = arith.constant 0 : i32
    return %c0_i32, %c0_i32_0 : i32, i32
  }
  func.func @transform_3(%arg0: i32) -> (i32, i32) {
    %c0_i32 = arith.constant 0 : i32
    %c0_i32_0 = arith.constant 0 : i32
    %c0_i32_1 = arith.constant 0 : i32
    return %c0_i32, %c0_i32_0 : i32, i32
  }
  func.func @transform_4(%arg0: i32) -> (i32, i32) {
    %c0_i32 = arith.constant 0 : i32
    %c0_i32_0 = arith.constant 0 : i32
    %c0_i32_1 = arith.constant 0 : i32
    return %c0_i32, %c0_i32_0 : i32, i32
  }
  func.func @transform_5(%arg0: i32) -> (i32, i32) {
    %c0_i32 = arith.constant 0 : i32
    %c0_i32_0 = arith.constant 0 : i32
    %c0_i32_1 = arith.constant 0 : i32
    return %c0_i32, %c0_i32_0 : i32, i32
  }
  func.func @transform_6(%arg0: i32) -> (i32, i32) {
    %c0_i32 = arith.constant 0 : i32
    %c0_i32_0 = arith.constant 0 : i32
    %c0_i32_1 = arith.constant 0 : i32
    return %c0_i32, %c0_i32_0 : i32, i32
  }
  func.func @transform_7(%arg0: i32) -> (i32, i32) {
    %c0_i32 = arith.constant 0 : i32
    %c0_i32_0 = arith.constant 0 : i32
    return %arg0, %c0_i32 : i32, i32
  }
}

module attributes {stable_mosaic.version = 11 : i64} {
  func.func @encoder_kernel(%arg0: i32, %arg1: memref<8x32xf32, #tpu.memory_space<vmem>>, %arg2: memref<32x128xbf16, #tpu.memory_space<vmem>>, %arg3: memref<1x128xbf16, #tpu.memory_space<vmem>>, %arg4: memref<128x128xbf16, #tpu.memory_space<vmem>>, %arg5: memref<1x128xbf16, #tpu.memory_space<vmem>>, %arg6: memref<128x128xbf16, #tpu.memory_space<vmem>>, %arg7: memref<1x128xf32, #tpu.memory_space<vmem>>, %arg8: memref<8x128xbf16, #tpu.memory_space<vmem>>) attributes {dimension_semantics = [#tpu.dimension_semantics<parallel>], iteration_bounds = array<i64: 1>, scalar_prefetch = 0 : i64, scratch_operands = 0 : i64, tpu.core_type = #tpu.core_type<tc>, window_params = [{transform_indices = @transform_0, window_bounds = array<i64: 8, 32>}, {pipeline_mode = #tpu.pipeline_mode<synchronous>, transform_indices = @transform_1, window_bounds = array<i64: 32, 128>}, {pipeline_mode = #tpu.pipeline_mode<synchronous>, transform_indices = @transform_2, window_bounds = array<i64: 1, 128>}, {pipeline_mode = #tpu.pipeline_mode<synchronous>, transform_indices = @transform_3, window_bounds = array<i64: 128, 128>}, {pipeline_mode = #tpu.pipeline_mode<synchronous>, transform_indices = @transform_4, window_bounds = array<i64: 1, 128>}, {pipeline_mode = #tpu.pipeline_mode<synchronous>, transform_indices = @transform_5, window_bounds = array<i64: 128, 128>}, {pipeline_mode = #tpu.pipeline_mode<synchronous>, transform_indices = @transform_6, window_bounds = array<i64: 1, 128>}, {transform_indices = @transform_7, window_bounds = array<i64: 8, 128>}]} {
    %c0 = arith.constant 0 : index
    %c0_0 = arith.constant 0 : index
    %0 = vector.load %arg1[%c0, %c0_0] : memref<8x32xf32, #tpu.memory_space<vmem>>, vector<8x32xf32>
    %1 = arith.truncf %0 : vector<8x32xf32> to vector<8x32xbf16>
    %c0_1 = arith.constant 0 : index
    %c0_2 = arith.constant 0 : index
    %2 = vector.load %arg2[%c0_1, %c0_2] : memref<32x128xbf16, #tpu.memory_space<vmem>>, vector<32x128xbf16>
    %cst = arith.constant dense<0.000000e+00> : vector<8x128xf32>
    %3 = tpu.matmul %1, %2, %cst {dimension_numbers = #tpu.dot_dimension_numbers<[1], [0], [0], [1], [0, 0, 1, 1], [], []>} : vector<8x32xbf16>, vector<32x128xbf16>, vector<8x128xf32> -> vector<8x128xf32>
    %4 = arith.truncf %3 : vector<8x128xf32> to vector<8x128xbf16>
    %c0_3 = arith.constant 0 : index
    %c0_4 = arith.constant 0 : index
    %5 = vector.load %arg3[%c0_3, %c0_4] : memref<1x128xbf16, #tpu.memory_space<vmem>>, vector<1x128xbf16>
    %6 = vector.broadcast %5 : vector<1x128xbf16> to vector<8x128xbf16>
    %7 = arith.addf %4, %6 : vector<8x128xbf16>
    %cst_5 = arith.constant 0.000000e+00 : bf16
    %8 = vector.broadcast %cst_5 : bf16 to vector<8x128xbf16>
    %9 = arith.maximumf %7, %8 : vector<8x128xbf16>
    %c0_6 = arith.constant 0 : index
    %c0_7 = arith.constant 0 : index
    %10 = vector.load %arg4[%c0_6, %c0_7] : memref<128x128xbf16, #tpu.memory_space<vmem>>, vector<128x128xbf16>
    %cst_8 = arith.constant dense<0.000000e+00> : vector<8x128xf32>
    %11 = tpu.matmul %9, %10, %cst_8 {dimension_numbers = #tpu.dot_dimension_numbers<[1], [0], [0], [1], [0, 0, 1, 1], [], []>} : vector<8x128xbf16>, vector<128x128xbf16>, vector<8x128xf32> -> vector<8x128xf32>
    %12 = arith.truncf %11 : vector<8x128xf32> to vector<8x128xbf16>
    %c0_9 = arith.constant 0 : index
    %c0_10 = arith.constant 0 : index
    %13 = vector.load %arg5[%c0_9, %c0_10] : memref<1x128xbf16, #tpu.memory_space<vmem>>, vector<1x128xbf16>
    %14 = vector.broadcast %13 : vector<1x128xbf16> to vector<8x128xbf16>
    %15 = arith.addf %12, %14 : vector<8x128xbf16>
    %cst_11 = arith.constant 0.000000e+00 : bf16
    %16 = vector.broadcast %cst_11 : bf16 to vector<8x128xbf16>
    %17 = arith.maximumf %15, %16 : vector<8x128xbf16>
    %c0_12 = arith.constant 0 : index
    %c0_13 = arith.constant 0 : index
    %18 = vector.load %arg6[%c0_12, %c0_13] : memref<128x128xbf16, #tpu.memory_space<vmem>>, vector<128x128xbf16>
    %cst_14 = arith.constant dense<0.000000e+00> : vector<8x128xf32>
    %19 = tpu.matmul %17, %18, %cst_14 {dimension_numbers = #tpu.dot_dimension_numbers<[1], [0], [0], [1], [0, 0, 1, 1], [], []>} : vector<8x128xbf16>, vector<128x128xbf16>, vector<8x128xf32> -> vector<8x128xf32>
    %c0_15 = arith.constant 0 : index
    %c0_16 = arith.constant 0 : index
    %20 = vector.load %arg7[%c0_15, %c0_16] : memref<1x128xf32, #tpu.memory_space<vmem>>, vector<1x128xf32>
    %21 = vector.broadcast %20 : vector<1x128xf32> to vector<8x128xf32>
    %22 = arith.addf %19, %21 : vector<8x128xf32>
    %23 = tpu.iota {dimensions = array<i32: 1>} : vector<8x128xi32>
    %c16_i32 = arith.constant 16 : i32
    %24 = vector.broadcast %c16_i32 : i32 to vector<8x128xi32>
    %25 = arith.cmpi slt, %23, %24 : vector<8x128xi32>
    %cst_17 = arith.constant 0.000000e+00 : f32
    %26 = vector.broadcast %cst_17 : f32 to vector<8x128xf32>
    %27 = arith.select %25, %26, %22 : vector<8x128xi1>, vector<8x128xf32>
    %28 = math.exp %27 : vector<8x128xf32>
    %29 = arith.select %25, %22, %28 : vector<8x128xi1>, vector<8x128xf32>
    %30 = arith.truncf %29 : vector<8x128xf32> to vector<8x128xbf16>
    %c0_18 = arith.constant 0 : index
    %c0_19 = arith.constant 0 : index
    %31 = vector.load %arg8[%c0_18, %c0_19] : memref<8x128xbf16, #tpu.memory_space<vmem>>, vector<8x128xbf16>
    tpu.vector_store %arg8[%c0_18, %c0_19], %30 {strides = array<i32>} : memref<8x128xbf16, #tpu.memory_space<vmem>>, vector<8x128xbf16>,
    return
  }
  func.func @transform_0(%arg0: i32) -> (i32, i32) {
    %c0_i32 = arith.constant 0 : i32
    %c0_i32_0 = arith.constant 0 : i32
    return %arg0, %c0_i32 : i32, i32
  }
  func.func @transform_1(%arg0: i32) -> (i32, i32) {
    %c0_i32 = arith.constant 0 : i32
    %c0_i32_0 = arith.constant 0 : i32
    %c0_i32_1 = arith.constant 0 : i32
    return %c0_i32, %c0_i32_0 : i32, i32
  }
  func.func @transform_2(%arg0: i32) -> (i32, i32) {
    %c0_i32 = arith.constant 0 : i32
    %c0_i32_0 = arith.constant 0 : i32
    %c0_i32_1 = arith.constant 0 : i32
    return %c0_i32, %c0_i32_0 : i32, i32
  }
  func.func @transform_3(%arg0: i32) -> (i32, i32) {
    %c0_i32 = arith.constant 0 : i32
    %c0_i32_0 = arith.constant 0 : i32
    %c0_i32_1 = arith.constant 0 : i32
    return %c0_i32, %c0_i32_0 : i32, i32
  }
  func.func @transform_4(%arg0: i32) -> (i32, i32) {
    %c0_i32 = arith.constant 0 : i32
    %c0_i32_0 = arith.constant 0 : i32
    %c0_i32_1 = arith.constant 0 : i32
    return %c0_i32, %c0_i32_0 : i32, i32
  }
  func.func @transform_5(%arg0: i32) -> (i32, i32) {
    %c0_i32 = arith.constant 0 : i32
    %c0_i32_0 = arith.constant 0 : i32
    %c0_i32_1 = arith.constant 0 : i32
    return %c0_i32, %c0_i32_0 : i32, i32
  }
  func.func @transform_6(%arg0: i32) -> (i32, i32) {
    %c0_i32 = arith.constant 0 : i32
    %c0_i32_0 = arith.constant 0 : i32
    %c0_i32_1 = arith.constant 0 : i32
    return %c0_i32, %c0_i32_0 : i32, i32
  }
  func.func @transform_7(%arg0: i32) -> (i32, i32) {
    %c0_i32 = arith.constant 0 : i32
    %c0_i32_0 = arith.constant 0 : i32
    return %arg0, %c0_i32 : i32, i32
  }
}

</mosaic_0001>

<llo_original>
// kernel: tpu_custom_call.1
$region0: #{tpu_custom_call.1}
  #allocation0 [shape = 'u32[]', space=smem, size = 0x4, offset = 0x4, fixed_abs, tag = 'smem constant byte address 0x4 - core index']
  #allocation1 [shape = 'u32[144,128]{1,0:T(1,128)}', space=vmem, size = 0x12000, scoped, tag = 'internal scratch']
  %s0 = inlined_call_operand.hbm [shape: f32[8,32], index: 0, kind: input, shape index: {}]
  %s1 = inlined_call_operand.hbm [shape: bf16[32,128], index: 1, kind: input, shape index: {}]
  %s2 = inlined_call_operand.vmem [shape: bf16[1,128], index: 2, kind: input, shape index: {}]
  %s3 = inlined_call_operand.hbm [shape: bf16[128,128], index: 3, kind: input, shape index: {}]
  %s4 = inlined_call_operand.vmem [shape: bf16[1,128], index: 4, kind: input, shape index: {}]
  %s5 = inlined_call_operand.hbm [shape: bf16[128,128], index: 5, kind: input, shape index: {}]
  %s6 = inlined_call_operand.vmem [shape: f32[1,128], index: 6, kind: input, shape index: {}]
  %s7 = inlined_call_operand.hbm [shape: bf16[8,128], index: 7, kind: output, shape index: {}]
  %s8 = sld [smem:[#allocation0]]
  $region54: #{tpu_custom_call.1} parent=0
    _
  %s10 = ssub.s32 1, %s8
  %s11 = scalar_select 0, %s10, %s8
  $region1: #{tpu_custom_call.1} parent=0
    #allocation2 [shape = 'u8[4096]{0}', space=vmem, size = 0x1000, scoped, tag = 'input window, operand 0, single buffered']
    #allocation3 [shape = 's32[1]{0}', space=sflag, size = 0x4, scoped, tag = 'scoped memory for tpu_custom_call.1']
    #allocation4 [shape = 's32[1]{0}', space=sflag, size = 0x4, scoped, tag = 'scoped memory for tpu_custom_call.1']
    #allocation5 [shape = 'u8[8192]{0}', space=vmem, size = 0x2000, scoped, tag = 'input window, operand 1, single buffered']
    #allocation6 [shape = 's32[1]{0}', space=sflag, size = 0x4, scoped, tag = 'scoped memory for tpu_custom_call.1']
    #allocation7 [shape = 'u8[32768]{0}', space=vmem, size = 0x8000, scoped, tag = 'input window, operand 3, single buffered']
    #allocation8 [shape = 'u8[32768]{0}', space=vmem, size = 0x8000, scoped, tag = 'input window, operand 5, single buffered']
    #allocation9 [shape = 's32[1]{0}', space=sflag, size = 0x4, scoped, tag = 'scoped memory for tpu_custom_call.1']
    #allocation10 [shape = 'u8[2048]{0}', space=vmem, size = 0x800, scoped, tag = 'output window, operand 0, single buffered']
    %12 = vsyncpa [#allocation3], 0
    %13 = vsyncpa [#allocation6], 0
    %14 = vsyncpa [#allocation9], 0
    %15 = vsyncpa [#allocation4], 0
    // Predicated region
    $region2: #{tpu_custom_call.1} parent=1 // pred_check
      _
    $region3: #{tpu_custom_call.1} parent=1 // pred_check_branch
      %17 = sbr.rel (0) target = $region5
    $region4: #{tpu_custom_call.1} parent=1 // pred_region
      %s19 = ssub.s32 128, 128
      %20 = vsyncadd [#allocation3], %s19
      %s22 = sshll.u32 [#allocation2], 4
      %s23 = int_to_ptr.vmem [resolvable:$true] %s22
      %25 = dma.hbm_to_vmem [thread:$0]  %s0, 128, %s23, [#allocation3]
    $region5: #{tpu_custom_call.1} parent=1 // pred_fallthru
      _
    // Predicated region
    $region6: #{tpu_custom_call.1} parent=1 // pred_check
      _
    $region7: #{tpu_custom_call.1} parent=1 // pred_check_branch
      %27 = sbr.rel (0) target = $region9
    $region8: #{tpu_custom_call.1} parent=1 // pred_region
      %s29 = ssub.s32 256, 256
      %30 = vsyncadd [#allocation6], %s29
      %s31 = sshll.u32 [#allocation5], 4
      %s32 = int_to_ptr.vmem [resolvable:$true] %s31
      %37 = dma.hbm_to_vmem [thread:$0]  %s1, 256, %s32, [#allocation6], 64, 64, 4
    $region9: #{tpu_custom_call.1} parent=1 // pred_fallthru
      _
    // Predicated region
    $region10: #{tpu_custom_call.1} parent=1 // pred_check
      _
    $region11: #{tpu_custom_call.1} parent=1 // pred_check_branch
      %39 = sbr.rel (0) target = $region13
    $region12: #{tpu_custom_call.1} parent=1 // pred_region
      _
    $region13: #{tpu_custom_call.1} parent=1 // pred_fallthru
      _
    // Predicated region
    $region14: #{tpu_custom_call.1} parent=1 // pred_check
      _
    $region15: #{tpu_custom_call.1} parent=1 // pred_check_branch
      %41 = sbr.rel (0) target = $region17
    $region16: #{tpu_custom_call.1} parent=1 // pred_region
      %s43 = ssub.s32 1024, 1024
      %44 = vsyncadd [#allocation6], %s43
      %s45 = sshll.u32 [#allocation7], 4
      %s46 = int_to_ptr.vmem [resolvable:$true] %s45
      %51 = dma.hbm_to_vmem [thread:$0]  %s3, 1024, %s46, [#allocation6], 64, 64, 4
    $region17: #{tpu_custom_call.1} parent=1 // pred_fallthru
      _
    // Predicated region
    $region18: #{tpu_custom_call.1} parent=1 // pred_check
      _
    $region19: #{tpu_custom_call.1} parent=1 // pred_check_branch
      %53 = sbr.rel (0) target = $region21
    $region20: #{tpu_custom_call.1} parent=1 // pred_region
      _
    $region21: #{tpu_custom_call.1} parent=1 // pred_fallthru
      _
    // Predicated region
    $region22: #{tpu_custom_call.1} parent=1 // pred_check
      _
    $region23: #{tpu_custom_call.1} parent=1 // pred_check_branch
      %55 = sbr.rel (0) target = $region25
    $region24: #{tpu_custom_call.1} parent=1 // pred_region
      %s57 = ssub.s32 1024, 1024
      %58 = vsyncadd [#allocation9], %s57
      %s59 = sshll.u32 [#allocation8], 4
      %s60 = int_to_ptr.vmem [resolvable:$true] %s59
      %65 = dma.hbm_to_vmem [thread:$0]  %s5, 1024, %s60, [#allocation9], 64, 64, 4
    $region25: #{tpu_custom_call.1} parent=1 // pred_fallthru
      _
    // Predicated region
    $region26: #{tpu_custom_call.1} parent=1 // pred_check
      _
    $region27: #{tpu_custom_call.1} parent=1 // pred_check_branch
      %67 = sbr.rel (0) target = $region29
    $region28: #{tpu_custom_call.1} parent=1 // pred_region
      _
    $region29: #{tpu_custom_call.1} parent=1 // pred_fallthru
      _
    // Predicated region
    $region30: #{tpu_custom_call.1} parent=1 // pred_check
      _
    $region31: #{tpu_custom_call.1} parent=1 // pred_check_branch
      %69 = sbr.rel (0) target = $region33
    $region32: #{tpu_custom_call.1} parent=1 // pred_region
      %70 = dma.done [#allocation3], 128
    $region33: #{tpu_custom_call.1} parent=1 // pred_fallthru
      _
    // Predicated region
    $region34: #{tpu_custom_call.1} parent=1 // pred_check
      _
    $region35: #{tpu_custom_call.1} parent=1 // pred_check_branch
      %72 = sbr.rel (0) target = $region37
    $region36: #{tpu_custom_call.1} parent=1 // pred_region
      %73 = dma.done [#allocation6], 256
    $region37: #{tpu_custom_call.1} parent=1 // pred_fallthru
      _
    // Predicated region
    $region38: #{tpu_custom_call.1} parent=1 // pred_check
      _
    $region39: #{tpu_custom_call.1} parent=1 // pred_check_branch
      %75 = sbr.rel (0) target = $region41
    $region40: #{tpu_custom_call.1} parent=1 // pred_region
      %76 = dma.done [#allocation6], 1024
    $region41: #{tpu_custom_call.1} parent=1 // pred_fallthru
      _
    // Predicated region
    $region42: #{tpu_custom_call.1} parent=1 // pred_check
      _
    $region43: #{tpu_custom_call.1} parent=1 // pred_check_branch
      %78 = sbr.rel (0) target = $region45
    $region44: #{tpu_custom_call.1} parent=1 // pred_region
      %79 = dma.done [#allocation9], 1024
    $region45: #{tpu_custom_call.1} parent=1 // pred_fallthru
      _
    %v81 = vld [vmem:[#allocation2] sm:$0xff]
    %v82 = vpack.c.bf16 %v81, %v81
    %v83 = vld [vmem:[#allocation5] sm:$0xf]
    %v84 = vld [vmem:[#allocation5 + $0x4] sm:$0xf]
    %v85 = vld [vmem:[#allocation5 + $0x8] sm:$0xf]
    %v86 = vld [vmem:[#allocation5 + $0xc] sm:$0xf]
    %v91 = vunpack.c.l.b16 %v83
    %v92 = vunpack.c.l.b16 %v84
    %v93 = vunpack.c.l.b16 %v85
    %v94 = vunpack.c.l.b16 %v86
    %v95 = vpack.c.b16 %v92, %v91
    %v96 = vpack.c.b16 %v94, %v93
    %vm99 = vcmask 261120
    %v101 = vsel %vm99, %v82, 0
    %103 = vmatprep.subr.bf16.mxu0 0
    %104 = vmatpush1.bf16.msra.mxu0 0
    %105 = vmatprep.subr.bf16.mxu0 0
    %106 = vmatpush1.bf16.msra.mxu0 0
    %107 = vmatprep.subr.bf16.mxu0 0
    %108 = vmatpush1.bf16.msra.mxu0 0
    %109 = vmatprep.subr.bf16.mxu0 0
    %110 = vmatpush1.bf16.msra.mxu0 0
    %111 = vmatprep.subr.bf16.mxu0 0
    %112 = vmatpush1.bf16.msra.mxu0 0
    %113 = vmatprep.subr.bf16.mxu0 0
    %114 = vmatpush1.bf16.msra.mxu0 0
    %115 = vmatprep.subr.bf16.mxu0 0
    %116 = vmatpush1.bf16.msra.mxu0 %v96
    %117 = vmatprep.subr.bf16.mxu0 0
    %118 = vmatpush1.bf16.msra.mxu0 %v95
    %119 = vmatprep.subr.bf16.mxu0 0
    %120 = vmatpush2.bf16.msra.mxu0 0
    %121 = vmatprep.subr.bf16.mxu0 0
    %122 = vmatpush2.bf16.msra.mxu0 0
    %123 = vmatprep.subr.bf16.mxu0 0
    %124 = vmatpush2.bf16.msra.mxu0 0
    %125 = vmatprep.subr.bf16.mxu0 0
    %126 = vmatpush2.bf16.msra.mxu0 0
    %127 = vmatprep.subr.bf16.mxu0 0
    %128 = vmatpush2.bf16.msra.mxu0 0
    %129 = vmatprep.subr.bf16.mxu0 0
    %130 = vmatpush2.bf16.msra.mxu0 0
    %131 = vmatprep.subr.bf16.mxu0 0
    %132 = vmatpush2.bf16.msra.mxu0 0
    %133 = vmatprep.subr.bf16.mxu0 0
    %134 = vmatpush2.bf16.msra.mxu0 0
    %135 = vmatprep.mubr.bf16.mxu0 0
    %136 = vmatmul.mubr.bf16.gmra.mxu0 %v101
    %v137 = vpop.f32.mrf.mxu0
    %v138 = vadd.f32 0.0, %v137
    %v139 = vpop.f32.mrf.mxu0
    %v140 = vpop.f32.mrf.mxu0
    %v141 = vpop.f32.mrf.mxu0
    %142 = vdwg.mxu0
    %v143 = vpack.c.bf16 %v138, %v138
    %v144 = vld [vmem:[%s2] sm:$0x1]
    %v146 = vpack.i.b16 %v144, %v144
    %v148 = vlaneseq
    %v149 = vshrl.u32 %v148, 7
    %v150 = vsub.s32 0, %v149
    %v151 = vrot.slane %v146, %v150
    %v152 = vadd.bf16 %v143, %v151
    %v153 = vmax.bf16 %v152, 0
    %v154 = vld [vmem:[#allocation7] sm:$0xf]
    %v155 = vld [vmem:[#allocation7 + $0x4] sm:$0xf]
    %v156 = vld [vmem:[#allocation7 + $0x8] sm:$0xf]
    %v157 = vld [vmem:[#allocation7 + $0xc] sm:$0xf]
    %v158 = vld [vmem:[#allocation7 + $0x10] sm:$0xf]
    %v159 = vld [vmem:[#allocation7 + $0x14] sm:$0xf]
    %v160 = vld [vmem:[#allocation7 + $0x18] sm:$0xf]
    %v161 = vld [vmem:[#allocation7 + $0x1c] sm:$0xf]
    %v162 = vld [vmem:[#allocation7 + $0x20] sm:$0xf]
    %v163 = vld [vmem:[#allocation7 + $0x24] sm:$0xf]
    %v164 = vld [vmem:[#allocation7 + $0x28] sm:$0xf]
    %v165 = vld [vmem:[#allocation7 + $0x2c] sm:$0xf]
    %v166 = vld [vmem:[#allocation7 + $0x30] sm:$0xf]
    %v167 = vld [vmem:[#allocation7 + $0x34] sm:$0xf]
    %v168 = vld [vmem:[#allocation7 + $0x38] sm:$0xf]
    %v169 = vld [vmem:[#allocation7 + $0x3c] sm:$0xf]
    %v186 = vunpack.c.l.b16 %v154
    %v187 = vunpack.c.l.b16 %v155
    %v188 = vunpack.c.l.b16 %v156
    %v189 = vunpack.c.l.b16 %v157
    %v190 = vunpack.c.l.b16 %v158
    %v191 = vunpack.c.l.b16 %v159
    %v192 = vunpack.c.l.b16 %v160
    %v193 = vunpack.c.l.b16 %v161
    %v194 = vunpack.c.l.b16 %v162
    %v195 = vunpack.c.l.b16 %v163
    %v196 = vunpack.c.l.b16 %v164
    %v197 = vunpack.c.l.b16 %v165
    %v198 = vunpack.c.l.b16 %v166
    %v199 = vunpack.c.l.b16 %v167
    %v200 = vunpack.c.l.b16 %v168
    %v201 = vunpack.c.l.b16 %v169
    %v202 = vpack.c.b16 %v187, %v186
    %v203 = vpack.c.b16 %v189, %v188
    %v204 = vpack.c.b16 %v191, %v190
    %v205 = vpack.c.b16 %v193, %v192
    %v206 = vpack.c.b16 %v195, %v194
    %v207 = vpack.c.b16 %v197, %v196
    %v208 = vpack.c.b16 %v199, %v198
    %v209 = vpack.c.b16 %v201, %v200
    %218 = vmatprep.subr.bf16.mxu0 0
    %219 = vmatpush1.bf16.msra.mxu0 %v209
    %220 = vmatprep.subr.bf16.mxu0 0
    %221 = vmatpush1.bf16.msra.mxu0 %v208
    %222 = vmatprep.subr.bf16.mxu0 0
    %223 = vmatpush1.bf16.msra.mxu0 %v207
    %224 = vmatprep.subr.bf16.mxu0 0
    %225 = vmatpush1.bf16.msra.mxu0 %v206
    %226 = vmatprep.subr.bf16.mxu0 0
    %227 = vmatpush1.bf16.msra.mxu0 %v205
    %228 = vmatprep.subr.bf16.mxu0 0
    %229 = vmatpush1.bf16.msra.mxu0 %v204
    %230 = vmatprep.subr.bf16.mxu0 0
    %231 = vmatpush1.bf16.msra.mxu0 %v203
    %232 = vmatprep.subr.bf16.mxu0 0
    %233 = vmatpush1.bf16.msra.mxu0 %v202
    %234 = vmatprep.subr.bf16.mxu0 0
    %235 = vmatpush2.bf16.msra.mxu0 0
    %236 = vmatprep.subr.bf16.mxu0 0
    %237 = vmatpush2.bf16.msra.mxu0 0
    %238 = vmatprep.subr.bf16.mxu0 0
    %239 = vmatpush2.bf16.msra.mxu0 0
    %240 = vmatprep.subr.bf16.mxu0 0
    %241 = vmatpush2.bf16.msra.mxu0 0
    %242 = vmatprep.subr.bf16.mxu0 0
    %243 = vmatpush2.bf16.msra.mxu0 0
    %244 = vmatprep.subr.bf16.mxu0 0
    %245 = vmatpush2.bf16.msra.mxu0 0
    %246 = vmatprep.subr.bf16.mxu0 0
    %247 = vmatpush2.bf16.msra.mxu0 0
    %248 = vmatprep.subr.bf16.mxu0 0
    %249 = vmatpush2.bf16.msra.mxu0 0
    %250 = vmatprep.mubr.bf16.mxu0 0
    %251 = vmatmul.mubr.bf16.gmra.mxu0 %v153
    %v252 = vpop.f32.mrf.mxu0
    %v253 = vadd.f32 0.0, %v252
    %v254 = vpop.f32.mrf.mxu0
    %v255 = vpop.f32.mrf.mxu0
    %v256 = vpop.f32.mrf.mxu0
    %257 = vdwg.mxu0
    %v258 = vpack.c.bf16 %v253, %v253
    %v259 = vld [vmem:[%s4] sm:$0x1]
    %v261 = vpack.i.b16 %v259, %v259
    %v263 = vlaneseq
    %v264 = vshrl.u32 %v263, 7
    %v265 = vsub.s32 0, %v264
    %v266 = vrot.slane %v261, %v265
    %v267 = vadd.bf16 %v258, %v266
    %v268 = vmax.bf16 %v267, 0
    %v269 = vld [vmem:[#allocation8] sm:$0xf]
    %v270 = vld [vmem:[#allocation8 + $0x4] sm:$0xf]
    %v271 = vld [vmem:[#allocation8 + $0x8] sm:$0xf]
    %v272 = vld [vmem:[#allocation8 + $0xc] sm:$0xf]
    %v273 = vld [vmem:[#allocation8 + $0x10] sm:$0xf]
    %v274 = vld [vmem:[#allocation8 + $0x14] sm:$0xf]
    %v275 = vld [vmem:[#allocation8 + $0x18] sm:$0xf]
    %v276 = vld [vmem:[#allocation8 + $0x1c] sm:$0xf]
    %v277 = vld [vmem:[#allocation8 + $0x20] sm:$0xf]
    %v278 = vld [vmem:[#allocation8 + $0x24] sm:$0xf]
    %v279 = vld [vmem:[#allocation8 + $0x28] sm:$0xf]
    %v280 = vld [vmem:[#allocation8 + $0x2c] sm:$0xf]
    %v281 = vld [vmem:[#allocation8 + $0x30] sm:$0xf]
    %v282 = vld [vmem:[#allocation8 + $0x34] sm:$0xf]
    %v283 = vld [vmem:[#allocation8 + $0x38] sm:$0xf]
    %v284 = vld [vmem:[#allocation8 + $0x3c] sm:$0xf]
    %v285 = vld [vmem:[%s6] sm:$0x1]
    %v287 = vlaneseq
    %v288 = vshrl.u32 %v287, 7
    %v289 = vsub.s32 0, %v288
    %v290 = vrot.slane %v285, %v289
    %v308 = vunpack.c.l.b16 %v269
    %v309 = vunpack.c.l.b16 %v270
    %v310 = vunpack.c.l.b16 %v271
    %v311 = vunpack.c.l.b16 %v272
    %v312 = vunpack.c.l.b16 %v273
    %v313 = vunpack.c.l.b16 %v274
    %v314 = vunpack.c.l.b16 %v275
    %v315 = vunpack.c.l.b16 %v276
    %v316 = vunpack.c.l.b16 %v277
    %v317 = vunpack.c.l.b16 %v278
    %v318 = vunpack.c.l.b16 %v279
    %v319 = vunpack.c.l.b16 %v280
    %v320 = vunpack.c.l.b16 %v281
    %v321 = vunpack.c.l.b16 %v282
    %v322 = vunpack.c.l.b16 %v283
    %v323 = vunpack.c.l.b16 %v284
    %v324 = vpack.c.b16 %v309, %v308
    %v325 = vpack.c.b16 %v311, %v310
    %v326 = vpack.c.b16 %v313, %v312
    %v327 = vpack.c.b16 %v315, %v314
    %v328 = vpack.c.b16 %v317, %v316
    %v329 = vpack.c.b16 %v319, %v318
    %v330 = vpack.c.b16 %v321, %v320
    %v331 = vpack.c.b16 %v323, %v322
    %340 = vmatprep.subr.bf16.mxu0 0
    %341 = vmatpush1.bf16.msra.mxu0 %v331
    %342 = vmatprep.subr.bf16.mxu0 0
    %343 = vmatpush1.bf16.msra.mxu0 %v330
    %344 = vmatprep.subr.bf16.mxu0 0
    %345 = vmatpush1.bf16.msra.mxu0 %v329
    %346 = vmatprep.subr.bf16.mxu0 0
    %347 = vmatpush1.bf16.msra.mxu0 %v328
    %348 = vmatprep.subr.bf16.mxu0 0
    %349 = vmatpush1.bf16.msra.mxu0 %v327
    %350 = vmatprep.subr.bf16.mxu0 0
    %351 = vmatpush1.bf16.msra.mxu0 %v326
    %352 = vmatprep.subr.bf16.mxu0 0
    %353 = vmatpush1.bf16.msra.mxu0 %v325
    %354 = vmatprep.subr.bf16.mxu0 0
    %355 = vmatpush1.bf16.msra.mxu0 %v324
    %356 = vmatprep.subr.bf16.mxu0 0
    %357 = vmatpush2.bf16.msra.mxu0 0
    %358 = vmatprep.subr.bf16.mxu0 0
    %359 = vmatpush2.bf16.msra.mxu0 0
    %360 = vmatprep.subr.bf16.mxu0 0
    %361 = vmatpush2.bf16.msra.mxu0 0
    %362 = vmatprep.subr.bf16.mxu0 0
    %363 = vmatpush2.bf16.msra.mxu0 0
    %364 = vmatprep.subr.bf16.mxu0 0
    %365 = vmatpush2.bf16.msra.mxu0 0
    %366 = vmatprep.subr.bf16.mxu0 0
    %367 = vmatpush2.bf16.msra.mxu0 0
    %368 = vmatprep.subr.bf16.mxu0 0
    %369 = vmatpush2.bf16.msra.mxu0 0
    %370 = vmatprep.subr.bf16.mxu0 0
    %371 = vmatpush2.bf16.msra.mxu0 0
    %372 = vmatprep.mubr.bf16.mxu0 0
    %373 = vmatmul.mubr.bf16.gmra.mxu0 %v268
    %v374 = vpop.f32.mrf.mxu0
    %v375 = vadd.f32 %v290, %v374
    %v376 = vpop.f32.mrf.mxu0
    %v377 = vpop.f32.mrf.mxu0
    %v378 = vpop.f32.mrf.mxu0
    %379 = vdwg.mxu0
    %v380 = vlaneseq
    %v381 = vand.u32 %v380, 127
    %vm382 = vcmp.lt.s32.totalorder %v381, 16
    %v383 = vsel %vm382, 0.0, %v375
    %v384 = vmul.f32 %v383, 1.442695
    %v385 = vpow.pop %v384
    %v386 = vsel %vm382, %v375, %v385
    %v387 = vpack.c.bf16 %v386, %v386
    %388 = vst [vmem:[#allocation10] sm:$0xf] %v387
    // Predicated region
    $region46: #{tpu_custom_call.1} parent=1 // pred_check
      _
    $region47: #{tpu_custom_call.1} parent=1 // pred_check_branch
      %390 = sbr.rel (0) target = $region49
    $region48: #{tpu_custom_call.1} parent=1 // pred_region
      %s392 = ssub.s32 64, 64
      %393 = vsyncadd [#allocation4], %s392
      %s395 = sshll.u32 [#allocation10], 4
      %s396 = int_to_ptr.vmem [resolvable:$true] %s395
      %398 = dma.vmem_to_hbm [thread:$0]  %s396, 64, %s7, [#allocation4]
    $region49: #{tpu_custom_call.1} parent=1 // pred_fallthru
      _
    // Predicated region
    $region50: #{tpu_custom_call.1} parent=1 // pred_check
      _
    $region51: #{tpu_custom_call.1} parent=1 // pred_check_branch
      %400 = sbr.rel (0) target = $region53
    $region52: #{tpu_custom_call.1} parent=1 // pred_region
      %401 = dma.done [#allocation4], 64
    $region53: #{tpu_custom_call.1} parent=1 // pred_fallthru
      _
    %402 = vsyncpa [#allocation3], 1
    %403 = vsyncpa [#allocation6], 1
    %404 = vsyncpa [#allocation9], 1
    %405 = vsyncpa [#allocation4], 1

// kernel: tpu_custom_call.1
$region0: #{tpu_custom_call.1}
  #allocation0 [shape = 'u32[]', space=smem, size = 0x4, offset = 0x4, fixed_abs, tag = 'smem constant byte address 0x4 - core index']
  #allocation1 [shape = 'u32[144,128]{1,0:T(1,128)}', space=vmem, size = 0x12000, scoped, tag = 'internal scratch']
  %s0 = inlined_call_operand.hbm [shape: f32[8,32], index: 0, kind: input, shape index: {}]
  %s1 = inlined_call_operand.hbm [shape: bf16[32,128], index: 1, kind: input, shape index: {}]
  %s2 = inlined_call_operand.vmem [shape: bf16[1,128], index: 2, kind: input, shape index: {}]
  %s3 = inlined_call_operand.hbm [shape: bf16[128,128], index: 3, kind: input, shape index: {}]
  %s4 = inlined_call_operand.vmem [shape: bf16[1,128], index: 4, kind: input, shape index: {}]
  %s5 = inlined_call_operand.hbm [shape: bf16[128,128], index: 5, kind: input, shape index: {}]
  %s6 = inlined_call_operand.vmem [shape: f32[1,128], index: 6, kind: input, shape index: {}]
  %s7 = inlined_call_operand.hbm [shape: bf16[8,128], index: 7, kind: output, shape index: {}]
  %s8 = sld [smem:[#allocation0]]
  $region54: #{tpu_custom_call.1} parent=0
    _
  %s10 = ssub.s32 1, %s8
  %s11 = scalar_select 0, %s10, %s8
  $region1: #{tpu_custom_call.1} parent=0
    #allocation2 [shape = 'u8[4096]{0}', space=vmem, size = 0x1000, scoped, tag = 'input window, operand 0, single buffered']
    #allocation3 [shape = 's32[1]{0}', space=sflag, size = 0x4, scoped, tag = 'scoped memory for tpu_custom_call.1']
    #allocation4 [shape = 's32[1]{0}', space=sflag, size = 0x4, scoped, tag = 'scoped memory for tpu_custom_call.1']
    #allocation5 [shape = 'u8[8192]{0}', space=vmem, size = 0x2000, scoped, tag = 'input window, operand 1, single buffered']
    #allocation6 [shape = 's32[1]{0}', space=sflag, size = 0x4, scoped, tag = 'scoped memory for tpu_custom_call.1']
    #allocation7 [shape = 'u8[32768]{0}', space=vmem, size = 0x8000, scoped, tag = 'input window, operand 3, single buffered']
    #allocation8 [shape = 'u8[32768]{0}', space=vmem, size = 0x8000, scoped, tag = 'input window, operand 5, single buffered']
    #allocation9 [shape = 's32[1]{0}', space=sflag, size = 0x4, scoped, tag = 'scoped memory for tpu_custom_call.1']
    #allocation10 [shape = 'u8[2048]{0}', space=vmem, size = 0x800, scoped, tag = 'output window, operand 0, single buffered']
    %12 = vsyncpa [#allocation3], 0
    %13 = vsyncpa [#allocation6], 0
    %14 = vsyncpa [#allocation9], 0
    %15 = vsyncpa [#allocation4], 0
    // Predicated region
    $region2: #{tpu_custom_call.1} parent=1 // pred_check
      _
    $region3: #{tpu_custom_call.1} parent=1 // pred_check_branch
      %17 = sbr.rel (0) target = $region5
    $region4: #{tpu_custom_call.1} parent=1 // pred_region
      %s19 = ssub.s32 128, 128
      %20 = vsyncadd [#allocation3], %s19
      %s22 = sshll.u32 [#allocation2], 4
      %s23 = int_to_ptr.vmem [resolvable:$true] %s22
      %25 = dma.hbm_to_vmem [thread:$0]  %s0, 128, %s23, [#allocation3]
    $region5: #{tpu_custom_call.1} parent=1 // pred_fallthru
      _
    // Predicated region
    $region6: #{tpu_custom_call.1} parent=1 // pred_check
      _
    $region7: #{tpu_custom_call.1} parent=1 // pred_check_branch
      %27 = sbr.rel (0) target = $region9
    $region8: #{tpu_custom_call.1} parent=1 // pred_region
      %s29 = ssub.s32 256, 256
      %30 = vsyncadd [#allocation6], %s29
      %s31 = sshll.u32 [#allocation5], 4
      %s32 = int_to_ptr.vmem [resolvable:$true] %s31
      %37 = dma.hbm_to_vmem [thread:$0]  %s1, 256, %s32, [#allocation6], 64, 64, 4
    $region9: #{tpu_custom_call.1} parent=1 // pred_fallthru
      _
    // Predicated region
    $region10: #{tpu_custom_call.1} parent=1 // pred_check
      _
    $region11: #{tpu_custom_call.1} parent=1 // pred_check_branch
      %39 = sbr.rel (0) target = $region13
    $region12: #{tpu_custom_call.1} parent=1 // pred_region
      _
    $region13: #{tpu_custom_call.1} parent=1 // pred_fallthru
      _
    // Predicated region
    $region14: #{tpu_custom_call.1} parent=1 // pred_check
      _
    $region15: #{tpu_custom_call.1} parent=1 // pred_check_branch
      %41 = sbr.rel (0) target = $region17
    $region16: #{tpu_custom_call.1} parent=1 // pred_region
      %s43 = ssub.s32 1024, 1024
      %44 = vsyncadd [#allocation6], %s43
      %s45 = sshll.u32 [#allocation7], 4
      %s46 = int_to_ptr.vmem [resolvable:$true] %s45
      %51 = dma.hbm_to_vmem [thread:$0]  %s3, 1024, %s46, [#allocation6], 64, 64, 4
    $region17: #{tpu_custom_call.1} parent=1 // pred_fallthru
      _
    // Predicated region
    $region18: #{tpu_custom_call.1} parent=1 // pred_check
      _
    $region19: #{tpu_custom_call.1} parent=1 // pred_check_branch
      %53 = sbr.rel (0) target = $region21
    $region20: #{tpu_custom_call.1} parent=1 // pred_region
      _
    $region21: #{tpu_custom_call.1} parent=1 // pred_fallthru
      _
    // Predicated region
    $region22: #{tpu_custom_call.1} parent=1 // pred_check
      _
    $region23: #{tpu_custom_call.1} parent=1 // pred_check_branch
      %55 = sbr.rel (0) target = $region25
    $region24: #{tpu_custom_call.1} parent=1 // pred_region
      %s57 = ssub.s32 1024, 1024
      %58 = vsyncadd [#allocation9], %s57
      %s59 = sshll.u32 [#allocation8], 4
      %s60 = int_to_ptr.vmem [resolvable:$true] %s59
      %65 = dma.hbm_to_vmem [thread:$0]  %s5, 1024, %s60, [#allocation9], 64, 64, 4
    $region25: #{tpu_custom_call.1} parent=1 // pred_fallthru
      _
    // Predicated region
    $region26: #{tpu_custom_call.1} parent=1 // pred_check
      _
    $region27: #{tpu_custom_call.1} parent=1 // pred_check_branch
      %67 = sbr.rel (0) target = $region29
    $region28: #{tpu_custom_call.1} parent=1 // pred_region
      _
    $region29: #{tpu_custom_call.1} parent=1 // pred_fallthru
      _
    // Predicated region
    $region30: #{tpu_custom_call.1} parent=1 // pred_check
      _
    $region31: #{tpu_custom_call.1} parent=1 // pred_check_branch
      %69 = sbr.rel (0) target = $region33
    $region32: #{tpu_custom_call.1} parent=1 // pred_region
      %70 = dma.done [#allocation3], 128
    $region33: #{tpu_custom_call.1} parent=1 // pred_fallthru
      _
    // Predicated region
    $region34: #{tpu_custom_call.1} parent=1 // pred_check
      _
    $region35: #{tpu_custom_call.1} parent=1 // pred_check_branch
      %72 = sbr.rel (0) target = $region37
    $region36: #{tpu_custom_call.1} parent=1 // pred_region
      %73 = dma.done [#allocation6], 256
    $region37: #{tpu_custom_call.1} parent=1 // pred_fallthru
      _
    // Predicated region
    $region38: #{tpu_custom_call.1} parent=1 // pred_check
      _
    $region39: #{tpu_custom_call.1} parent=1 // pred_check_branch
      %75 = sbr.rel (0) target = $region41
    $region40: #{tpu_custom_call.1} parent=1 // pred_region
      %76 = dma.done [#allocation6], 1024
    $region41: #{tpu_custom_call.1} parent=1 // pred_fallthru
      _
    // Predicated region
    $region42: #{tpu_custom_call.1} parent=1 // pred_check
      _
    $region43: #{tpu_custom_call.1} parent=1 // pred_check_branch
      %78 = sbr.rel (0) target = $region45
    $region44: #{tpu_custom_call.1} parent=1 // pred_region
      %79 = dma.done [#allocation9], 1024
    $region45: #{tpu_custom_call.1} parent=1 // pred_fallthru
      _
    %v81 = vld [vmem:[#allocation2] sm:$0xff]
    %v82 = vpack.c.bf16 %v81, %v81
    %v83 = vld [vmem:[#allocation5] sm:$0xf]
    %v84 = vld [vmem:[#allocation5 + $0x4] sm:$0xf]
    %v85 = vld [vmem:[#allocation5 + $0x8] sm:$0xf]
    %v86 = vld [vmem:[#allocation5 + $0xc] sm:$0xf]
    %v91 = vunpack.c.l.b16 %v83
    %v92 = vunpack.c.l.b16 %v84
    %v93 = vunpack.c.l.b16 %v85
    %v94 = vunpack.c.l.b16 %v86
    %v95 = vpack.c.b16 %v92, %v91
    %v96 = vpack.c.b16 %v94, %v93
    %vm99 = vcmask 261120
    %v101 = vsel %vm99, %v82, 0
    %103 = vmatprep.subr.bf16.mxu0 0
    %104 = vmatpush1.bf16.msra.mxu0 0
    %105 = vmatprep.subr.bf16.mxu0 0
    %106 = vmatpush1.bf16.msra.mxu0 0
    %107 = vmatprep.subr.bf16.mxu0 0
    %108 = vmatpush1.bf16.msra.mxu0 0
    %109 = vmatprep.subr.bf16.mxu0 0
    %110 = vmatpush1.bf16.msra.mxu0 0
    %111 = vmatprep.subr.bf16.mxu0 0
    %112 = vmatpush1.bf16.msra.mxu0 0
    %113 = vmatprep.subr.bf16.mxu0 0
    %114 = vmatpush1.bf16.msra.mxu0 0
    %115 = vmatprep.subr.bf16.mxu0 0
    %116 = vmatpush1.bf16.msra.mxu0 %v96
    %117 = vmatprep.subr.bf16.mxu0 0
    %118 = vmatpush1.bf16.msra.mxu0 %v95
    %119 = vmatprep.subr.bf16.mxu0 0
    %120 = vmatpush2.bf16.msra.mxu0 0
    %121 = vmatprep.subr.bf16.mxu0 0
    %122 = vmatpush2.bf16.msra.mxu0 0
    %123 = vmatprep.subr.bf16.mxu0 0
    %124 = vmatpush2.bf16.msra.mxu0 0
    %125 = vmatprep.subr.bf16.mxu0 0
    %126 = vmatpush2.bf16.msra.mxu0 0
    %127 = vmatprep.subr.bf16.mxu0 0
    %128 = vmatpush2.bf16.msra.mxu0 0
    %129 = vmatprep.subr.bf16.mxu0 0
    %130 = vmatpush2.bf16.msra.mxu0 0
    %131 = vmatprep.subr.bf16.mxu0 0
    %132 = vmatpush2.bf16.msra.mxu0 0
    %133 = vmatprep.subr.bf16.mxu0 0
    %134 = vmatpush2.bf16.msra.mxu0 0
    %135 = vmatprep.mubr.bf16.mxu0 0
    %136 = vmatmul.mubr.bf16.gmra.mxu0 %v101
    %v137 = vpop.f32.mrf.mxu0
    %v138 = vadd.f32 0.0, %v137
    %v139 = vpop.f32.mrf.mxu0
    %v140 = vpop.f32.mrf.mxu0
    %v141 = vpop.f32.mrf.mxu0
    %142 = vdwg.mxu0
    %v143 = vpack.c.bf16 %v138, %v138
    %v144 = vld [vmem:[%s2] sm:$0x1]
    %v146 = vpack.i.b16 %v144, %v144
    %v148 = vlaneseq
    %v149 = vshrl.u32 %v148, 7
    %v150 = vsub.s32 0, %v149
    %v151 = vrot.slane %v146, %v150
    %v152 = vadd.bf16 %v143, %v151
    %v153 = vmax.bf16 %v152, 0
    %v154 = vld [vmem:[#allocation7] sm:$0xf]
    %v155 = vld [vmem:[#allocation7 + $0x4] sm:$0xf]
    %v156 = vld [vmem:[#allocation7 + $0x8] sm:$0xf]
    %v157 = vld [vmem:[#allocation7 + $0xc] sm:$0xf]
    %v158 = vld [vmem:[#allocation7 + $0x10] sm:$0xf]
    %v159 = vld [vmem:[#allocation7 + $0x14] sm:$0xf]
    %v160 = vld [vmem:[#allocation7 + $0x18] sm:$0xf]
    %v161 = vld [vmem:[#allocation7 + $0x1c] sm:$0xf]
    %v162 = vld [vmem:[#allocation7 + $0x20] sm:$0xf]
    %v163 = vld [vmem:[#allocation7 + $0x24] sm:$0xf]
    %v164 = vld [vmem:[#allocation7 + $0x28] sm:$0xf]
    %v165 = vld [vmem:[#allocation7 + $0x2c] sm:$0xf]
    %v166 = vld [vmem:[#allocation7 + $0x30] sm:$0xf]
    %v167 = vld [vmem:[#allocation7 + $0x34] sm:$0xf]
    %v168 = vld [vmem:[#allocation7 + $0x38] sm:$0xf]
    %v169 = vld [vmem:[#allocation7 + $0x3c] sm:$0xf]
    %v186 = vunpack.c.l.b16 %v154
    %v187 = vunpack.c.l.b16 %v155
    %v188 = vunpack.c.l.b16 %v156
    %v189 = vunpack.c.l.b16 %v157
    %v190 = vunpack.c.l.b16 %v158
    %v191 = vunpack.c.l.b16 %v159
    %v192 = vunpack.c.l.b16 %v160
    %v193 = vunpack.c.l.b16 %v161
    %v194 = vunpack.c.l.b16 %v162
    %v195 = vunpack.c.l.b16 %v163
    %v196 = vunpack.c.l.b16 %v164
    %v197 = vunpack.c.l.b16 %v165
    %v198 = vunpack.c.l.b16 %v166
    %v199 = vunpack.c.l.b16 %v167
    %v200 = vunpack.c.l.b16 %v168
    %v201 = vunpack.c.l.b16 %v169
    %v202 = vpack.c.b16 %v187, %v186
    %v203 = vpack.c.b16 %v189, %v188
    %v204 = vpack.c.b16 %v191, %v190
    %v205 = vpack.c.b16 %v193, %v192
    %v206 = vpack.c.b16 %v195, %v194
    %v207 = vpack.c.b16 %v197, %v196
    %v208 = vpack.c.b16 %v199, %v198
    %v209 = vpack.c.b16 %v201, %v200
    %218 = vmatprep.subr.bf16.mxu0 0
    %219 = vmatpush1.bf16.msra.mxu0 %v209
    %220 = vmatprep.subr.bf16.mxu0 0
    %221 = vmatpush1.bf16.msra.mxu0 %v208
    %222 = vmatprep.subr.bf16.mxu0 0
    %223 = vmatpush1.bf16.msra.mxu0 %v207
    %224 = vmatprep.subr.bf16.mxu0 0
    %225 = vmatpush1.bf16.msra.mxu0 %v206
    %226 = vmatprep.subr.bf16.mxu0 0
    %227 = vmatpush1.bf16.msra.mxu0 %v205
    %228 = vmatprep.subr.bf16.mxu0 0
    %229 = vmatpush1.bf16.msra.mxu0 %v204
    %230 = vmatprep.subr.bf16.mxu0 0
    %231 = vmatpush1.bf16.msra.mxu0 %v203
    %232 = vmatprep.subr.bf16.mxu0 0
    %233 = vmatpush1.bf16.msra.mxu0 %v202
    %234 = vmatprep.subr.bf16.mxu0 0
    %235 = vmatpush2.bf16.msra.mxu0 0
    %236 = vmatprep.subr.bf16.mxu0 0
    %237 = vmatpush2.bf16.msra.mxu0 0
    %238 = vmatprep.subr.bf16.mxu0 0
    %239 = vmatpush2.bf16.msra.mxu0 0
    %240 = vmatprep.subr.bf16.mxu0 0
    %241 = vmatpush2.bf16.msra.mxu0 0
    %242 = vmatprep.subr.bf16.mxu0 0
    %243 = vmatpush2.bf16.msra.mxu0 0
    %244 = vmatprep.subr.bf16.mxu0 0
    %245 = vmatpush2.bf16.msra.mxu0 0
    %246 = vmatprep.subr.bf16.mxu0 0
    %247 = vmatpush2.bf16.msra.mxu0 0
    %248 = vmatprep.subr.bf16.mxu0 0
    %249 = vmatpush2.bf16.msra.mxu0 0
    %250 = vmatprep.mubr.bf16.mxu0 0
    %251 = vmatmul.mubr.bf16.gmra.mxu0 %v153
    %v252 = vpop.f32.mrf.mxu0
    %v253 = vadd.f32 0.0, %v252
    %v254 = vpop.f32.mrf.mxu0
    %v255 = vpop.f32.mrf.mxu0
    %v256 = vpop.f32.mrf.mxu0
    %257 = vdwg.mxu0
    %v258 = vpack.c.bf16 %v253, %v253
    %v259 = vld [vmem:[%s4] sm:$0x1]
    %v261 = vpack.i.b16 %v259, %v259
    %v263 = vlaneseq
    %v264 = vshrl.u32 %v263, 7
    %v265 = vsub.s32 0, %v264
    %v266 = vrot.slane %v261, %v265
    %v267 = vadd.bf16 %v258, %v266
    %v268 = vmax.bf16 %v267, 0
    %v269 = vld [vmem:[#allocation8] sm:$0xf]
    %v270 = vld [vmem:[#allocation8 + $0x4] sm:$0xf]
    %v271 = vld [vmem:[#allocation8 + $0x8] sm:$0xf]
    %v272 = vld [vmem:[#allocation8 + $0xc] sm:$0xf]
    %v273 = vld [vmem:[#allocation8 + $0x10] sm:$0xf]
    %v274 = vld [vmem:[#allocation8 + $0x14] sm:$0xf]
    %v275 = vld [vmem:[#allocation8 + $0x18] sm:$0xf]
    %v276 = vld [vmem:[#allocation8 + $0x1c] sm:$0xf]
    %v277 = vld [vmem:[#allocation8 + $0x20] sm:$0xf]
    %v278 = vld [vmem:[#allocation8 + $0x24] sm:$0xf]
    %v279 = vld [vmem:[#allocation8 + $0x28] sm:$0xf]
    %v280 = vld [vmem:[#allocation8 + $0x2c] sm:$0xf]
    %v281 = vld [vmem:[#allocation8 + $0x30] sm:$0xf]
    %v282 = vld [vmem:[#allocation8 + $0x34] sm:$0xf]
    %v283 = vld [vmem:[#allocation8 + $0x38] sm:$0xf]
    %v284 = vld [vmem:[#allocation8 + $0x3c] sm:$0xf]
    %v285 = vld [vmem:[%s6] sm:$0x1]
    %v287 = vlaneseq
    %v288 = vshrl.u32 %v287, 7
    %v289 = vsub.s32 0, %v288
    %v290 = vrot.slane %v285, %v289
    %v308 = vunpack.c.l.b16 %v269
    %v309 = vunpack.c.l.b16 %v270
    %v310 = vunpack.c.l.b16 %v271
    %v311 = vunpack.c.l.b16 %v272
    %v312 = vunpack.c.l.b16 %v273
    %v313 = vunpack.c.l.b16 %v274
    %v314 = vunpack.c.l.b16 %v275
    %v315 = vunpack.c.l.b16 %v276
    %v316 = vunpack.c.l.b16 %v277
    %v317 = vunpack.c.l.b16 %v278
    %v318 = vunpack.c.l.b16 %v279
    %v319 = vunpack.c.l.b16 %v280
    %v320 = vunpack.c.l.b16 %v281
    %v321 = vunpack.c.l.b16 %v282
    %v322 = vunpack.c.l.b16 %v283
    %v323 = vunpack.c.l.b16 %v284
    %v324 = vpack.c.b16 %v309, %v308
    %v325 = vpack.c.b16 %v311, %v310
    %v326 = vpack.c.b16 %v313, %v312
    %v327 = vpack.c.b16 %v315, %v314
    %v328 = vpack.c.b16 %v317, %v316
    %v329 = vpack.c.b16 %v319, %v318
    %v330 = vpack.c.b16 %v321, %v320
    %v331 = vpack.c.b16 %v323, %v322
    %340 = vmatprep.subr.bf16.mxu0 0
    %341 = vmatpush1.bf16.msra.mxu0 %v331
    %342 = vmatprep.subr.bf16.mxu0 0
    %343 = vmatpush1.bf16.msra.mxu0 %v330
    %344 = vmatprep.subr.bf16.mxu0 0
    %345 = vmatpush1.bf16.msra.mxu0 %v329
    %346 = vmatprep.subr.bf16.mxu0 0
    %347 = vmatpush1.bf16.msra.mxu0 %v328
    %348 = vmatprep.subr.bf16.mxu0 0
    %349 = vmatpush1.bf16.msra.mxu0 %v327
    %350 = vmatprep.subr.bf16.mxu0 0
    %351 = vmatpush1.bf16.msra.mxu0 %v326
    %352 = vmatprep.subr.bf16.mxu0 0
    %353 = vmatpush1.bf16.msra.mxu0 %v325
    %354 = vmatprep.subr.bf16.mxu0 0
    %355 = vmatpush1.bf16.msra.mxu0 %v324
    %356 = vmatprep.subr.bf16.mxu0 0
    %357 = vmatpush2.bf16.msra.mxu0 0
    %358 = vmatprep.subr.bf16.mxu0 0
    %359 = vmatpush2.bf16.msra.mxu0 0
    %360 = vmatprep.subr.bf16.mxu0 0
    %361 = vmatpush2.bf16.msra.mxu0 0
    %362 = vmatprep.subr.bf16.mxu0 0
    %363 = vmatpush2.bf16.msra.mxu0 0
    %364 = vmatprep.subr.bf16.mxu0 0
    %365 = vmatpush2.bf16.msra.mxu0 0
    %366 = vmatprep.subr.bf16.mxu0 0
    %367 = vmatpush2.bf16.msra.mxu0 0
    %368 = vmatprep.subr.bf16.mxu0 0
    %369 = vmatpush2.bf16.msra.mxu0 0
    %370 = vmatprep.subr.bf16.mxu0 0
    %371 = vmatpush2.bf16.msra.mxu0 0
    %372 = vmatprep.mubr.bf16.mxu0 0
    %373 = vmatmul.mubr.bf16.gmra.mxu0 %v268
    %v374 = vpop.f32.mrf.mxu0
    %v375 = vadd.f32 %v290, %v374
    %v376 = vpop.f32.mrf.mxu0
    %v377 = vpop.f32.mrf.mxu0
    %v378 = vpop.f32.mrf.mxu0
    %379 = vdwg.mxu0
    %v380 = vlaneseq
    %v381 = vand.u32 %v380, 127
    %vm382 = vcmp.lt.s32.totalorder %v381, 16
    %v383 = vsel %vm382, 0.0, %v375
    %v384 = vmul.f32 %v383, 1.442695
    %v385 = vpow.pop %v384
    %v386 = vsel %vm382, %v375, %v385
    %v387 = vpack.c.bf16 %v386, %v386
    %388 = vst [vmem:[#allocation10] sm:$0xf] %v387
    // Predicated region
    $region46: #{tpu_custom_call.1} parent=1 // pred_check
      _
    $region47: #{tpu_custom_call.1} parent=1 // pred_check_branch
      %390 = sbr.rel (0) target = $region49
    $region48: #{tpu_custom_call.1} parent=1 // pred_region
      %s392 = ssub.s32 64, 64
      %393 = vsyncadd [#allocation4], %s392
      %s395 = sshll.u32 [#allocation10], 4
      %s396 = int_to_ptr.vmem [resolvable:$true] %s395
      %398 = dma.vmem_to_hbm [thread:$0]  %s396, 64, %s7, [#allocation4]
    $region49: #{tpu_custom_call.1} parent=1 // pred_fallthru
      _
    // Predicated region
    $region50: #{tpu_custom_call.1} parent=1 // pred_check
      _
    $region51: #{tpu_custom_call.1} parent=1 // pred_check_branch
      %400 = sbr.rel (0) target = $region53
    $region52: #{tpu_custom_call.1} parent=1 // pred_region
      %401 = dma.done [#allocation4], 64
    $region53: #{tpu_custom_call.1} parent=1 // pred_fallthru
      _
    %402 = vsyncpa [#allocation3], 1
    %403 = vsyncpa [#allocation6], 1
    %404 = vsyncpa [#allocation9], 1
    %405 = vsyncpa [#allocation4], 1

</llo_original>
